<compile_context>
chip_gen: v7x
topology: tpu7x:2x2x1
jax: 0.10.0
libtpu: 0.0.40
codegen_flags: <defaults>
</compile_context>

<pallas_src>
import functools

import jax
import jax.numpy as jnp
from jax import lax
from jax.experimental import pallas as pl
from jax.experimental.pallas import tpu as pltpu


# ---------------------------------------------------------------------------
# Pallas kernels
# ---------------------------------------------------------------------------
def proj_kernel(*refs, n_in):
    """One row tile of: out = sum_i x_i @ w_i + bias."""
    x_refs = refs[:n_in]
    w_refs = refs[n_in:2 * n_in]
    b_ref = refs[2 * n_in]
    o_ref = refs[2 * n_in + 1]
    acc = jnp.dot(x_refs[0][...], w_refs[0][...],
                  preferred_element_type=jnp.float32)
    for xr, wr in zip(x_refs[1:], w_refs[1:]):
        acc = acc + jnp.dot(xr[...], wr[...], preferred_element_type=jnp.float32)
    o_ref[...] = (acc + b_ref[...]).astype(o_ref.dtype)


def bilstm_block_kernel(gpf_ref, gpb_ref, whh_ref, outf_ref, outb_ref,
                        h_ref, c_ref, *, hidden, tc, n_blocks, t_real, unroll):
    """One time block (tc steps) of a fused bidirectional LSTM layer.

    gpf_ref : (tc, B, 8H) precomputed x@W_ih + bias, time block tb (fwd walk)
    gpb_ref : (tc, B, 8H) same array, mirrored block nT-1-tb (bwd walk)
    whh_ref : (2H, 8H) block-structured recurrent weight for BOTH directions
    Gate column order (packed at init): [i_f i_b | f_f f_b | o_f o_b | g_f g_b].
    h/c scratch is the fused (B, 2H) state [h_f | h_b]; persists across grid
    steps (the time recurrence).
    """
    tb = pl.program_id(0)
    H = hidden
    B = h_ref.shape[0]

    @pl.when(tb == 0)
    def _():
        h_ref[...] = jnp.zeros_like(h_ref)
        c_ref[...] = jnp.zeros_like(c_ref)

    whh = whh_ref[...].astype(jnp.float32)                 # (2H, 8H)

    # Interleaved gate columns: even H-blocks belong to the forward direction.
    gcols = lax.broadcasted_iota(jnp.int32, (B, 8 * H), 1)
    is_fwd_gate = ((gcols // H) % 2) == 0
    hcols = lax.broadcasted_iota(jnp.int32, (B, 2 * H), 1)
    is_fwd_state = hcols < H

    t0_f = tb * tc                       # global time of fwd step tt in block
    t0_b = (n_blocks - 1 - tb) * tc      # global time base of the bwd block
    padded = t_real < n_blocks * tc      # static (Python) — padding present?

    def step(tt, carry):
        h, c = carry
        rt = tc - 1 - tt
        # Merge: forward gate columns from block tb / local time tt, backward
        # gate columns from the mirrored block / local time rt.
        gpre = jnp.where(is_fwd_gate,
                         gpf_ref[tt].astype(jnp.float32),
                         gpb_ref[rt].astype(jnp.float32))
        gates = gpre + jnp.dot(h, whh, preferred_element_type=jnp.float32)
        sig = jax.nn.sigmoid(gates[:, :6 * H])   # [i_f i_b | f_f f_b | o_f o_b]
        g = jnp.tanh(gates[:, 6 * H:])           # [g_f g_b]
        i_g = sig[:, :2 * H]
        f_g = sig[:, 2 * H:4 * H]
        o_g = sig[:, 4 * H:6 * H]
        c_new = f_g * c + i_g * g
        h_new = o_g * jnp.tanh(c_new)
        if padded:
            # Hold each direction's state on padded timesteps (>= t_real); this
            # keeps the backward chain's initial state exactly zero.
            upd = jnp.where(is_fwd_state, t0_f + tt < t_real, t0_b + rt < t_real)
            h_new = jnp.where(upd, h_new, h)
            c_new = jnp.where(upd, c_new, c)
        outf_ref[tt] = h_new[:, :H].astype(outf_ref.dtype)
        outb_ref[rt] = h_new[:, H:].astype(outb_ref.dtype)
        return h_new, c_new

    h, c = lax.fori_loop(0, tc, step, (h_ref[...], c_ref[...]), unroll=unroll)
    h_ref[...] = h
    c_ref[...] = c


# ---------------------------------------------------------------------------
# Wrappers around pallas_call
# ---------------------------------------------------------------------------
def projection(x_parts, w_parts, bias, *, row_tile=512, out_dtype=None):
    """sum_i x_i @ w_i + bias, tiled over rows of the (large) leading dim."""
    N = x_parts[0].shape[0]
    Dout = w_parts[0].shape[1]
    out_dtype = out_dtype or x_parts[0].dtype
    tn = N if N <= row_tile else row_tile
    grid = (pl.cdiv(N, tn),)
    x_specs = [pl.BlockSpec((tn, xp.shape[1]), lambda i: (i, 0))
               for xp in x_parts]
    # Constant-index weights/bias: single-buffer them (halves their VMEM
    # footprint; matters on v7x's 64 MiB VMEM at production sizes).
    w_specs = [pl.BlockSpec(wp.shape, lambda i: (0, 0),
                            pipeline_mode=pl.Buffered(1)) for wp in w_parts]
    b_spec = pl.BlockSpec((1, Dout), lambda i: (0, 0),
                          pipeline_mode=pl.Buffered(1))
    return pl.pallas_call(
        functools.partial(proj_kernel, n_in=len(x_parts)),
        out_shape=jax.ShapeDtypeStruct((N, Dout), out_dtype),
        grid=grid,
        in_specs=x_specs + w_specs + [b_spec],
        out_specs=pl.BlockSpec((tn, Dout), lambda i: (i, 0)),
        compiler_params=pltpu.CompilerParams(
            dimension_semantics=("parallel",),
            vmem_limit_bytes=64 * 1024 * 1024),
    )(*x_parts, *w_parts, bias)


def bilstm_layer(gates_pre, whh_block, *, seq_len, time_block=8, unroll=4):
    """Fused bidirectional LSTM recurrence for one layer.

    gates_pre : (Tpad, B, 8H) precomputed x@W_ih + bias, interleaved gate
                columns [i_f i_b f_f f_b o_f o_b g_f g_b]; Tpad % time_block==0.
    whh_block : (2H, 8H) block-structured recurrent weight (both directions).
    seq_len   : true (unpadded) sequence length.
    returns (out_fwd, out_bwd), each (Tpad, B, H), time-aligned with the input.
    """
    Tpad, B, G8 = gates_pre.shape
    H = G8 // 8
    tc = min(time_block, Tpad)
    assert Tpad % tc == 0, (Tpad, tc)
    nT = Tpad // tc
    u = min(unroll, tc)
    while tc % u:                       # keep unroll a divisor of the block
        u -= 1

    kernel = functools.partial(bilstm_block_kernel, hidden=H, tc=tc,
                               n_blocks=nT, t_real=seq_len, unroll=u)
    return pl.pallas_call(
        kernel,
        out_shape=(jax.ShapeDtypeStruct((Tpad, B, H), gates_pre.dtype),
                   jax.ShapeDtypeStruct((Tpad, B, H), gates_pre.dtype)),
        grid_spec=pltpu.PrefetchScalarGridSpec(
            num_scalar_prefetch=0,
            grid=(nT,),
            in_specs=[
                # full-width gates, forward time block tb
                pl.BlockSpec((tc, B, 8 * H), lambda tb: (tb, 0, 0)),
                # full-width gates, mirrored time block for the backward walk
                pl.BlockSpec((tc, B, 8 * H), lambda tb: (nT - 1 - tb, 0, 0)),
                pl.BlockSpec((2 * H, 8 * H), lambda tb: (0, 0),
                             pipeline_mode=pl.Buffered(1)),
            ],
            out_specs=[
                pl.BlockSpec((tc, B, H), lambda tb: (tb, 0, 0)),
                pl.BlockSpec((tc, B, H), lambda tb: (nT - 1 - tb, 0, 0)),
            ],
            scratch_shapes=[
                pltpu.VMEM((B, 2 * H), jnp.float32),   # h = [h_f | h_b]
                pltpu.VMEM((B, 2 * H), jnp.float32),   # c = [c_f | c_b]
            ],
        ),
        compiler_params=pltpu.CompilerParams(
            dimension_semantics=("arbitrary",),        # time recurrence is serial
            vmem_limit_bytes=64 * 1024 * 1024),
    )(gates_pre, gates_pre, whh_block)


# ---------------------------------------------------------------------------
# UnAlignOcrDecoder forward (glue in plain JAX, compute in Pallas)
# ---------------------------------------------------------------------------
def unalign_ocr_decoder_forward(encoder_output, packed, *, time_block=8,
                                unroll=4, gates_dtype=jnp.float32):
    # TODO(synk): batch OCR lines so B >= 8 sublanes before calling the decoder.
    embeddings = encoder_output['encoder_out']              # (T, B, D)
    T, B, D = embeddings.shape

    tc = min(time_block, T)
    Tpad = pl.cdiv(T, tc) * tc
    x = embeddings
    if Tpad != T:
        x = jnp.concatenate(
            [x, jnp.zeros((Tpad - T, B, D), x.dtype)], axis=0)

    x_parts = [x.reshape(Tpad * B, D)]
    out_f = out_b = None
    for layer in packed['layers']:
        H = layer['whh_block'].shape[0] // 2
        # Hoisted input projection for BOTH directions: one big MXU matmul.
        # TODO(synk): overlap this with the recurrence via pltpu.emit_pipeline.
        gates_pre = projection(x_parts, layer['wih_parts'], layer['b_cat'],
                               out_dtype=gates_dtype)
        gates_pre = gates_pre.reshape(Tpad, B, 8 * H)
        out_f, out_b = bilstm_layer(gates_pre, layer['whh_block'],
                                    seq_len=T, time_block=tc, unroll=unroll)
        # Next layer consumes the two direction outputs directly (no concat).
        x_parts = [out_f.reshape(Tpad * B, H), out_b.reshape(Tpad * B, H)]

    H = out_f.shape[-1]
    # (T*B, 2H) view, matching lstm_output.view(-1, 2H) of the PyTorch module.
    lstm_output_view = jnp.concatenate([out_f[:T], out_b[:T]], axis=-1)
    lstm_output_view = lstm_output_view.reshape(T * B, 2 * H).astype(jnp.float32)

    # Classifier weights are lane-padded to a multiple of 128 output columns.
    logits_flat = projection([lstm_output_view],
                             [packed['cls_w_t']], packed['cls_b'])
    logits = logits_flat[:, :packed['vocab']].reshape(T, B, -1)

    return {
        'input_shape': encoder_output['input_shape'],
        'encoder_cnn_shape': encoder_output['encoder_cnn_shape'],
        'embeddings': lstm_output_view,
        'logits': logits,
    }


# ---------------------------------------------------------------------------
# Parameters: raw (PyTorch layout) init + kernel-friendly packing
# ---------------------------------------------------------------------------
def init_raw_params(key, encoder_dim, units, num_layers, vocab):
    """PyTorch layouts: weight_ih (4H, Din), weight_hh (4H, H), biases (4H,)
    in gate order [i, f, g, o]; Linear weight (V, 2H), bias (V,)."""
    def u(k, shape):
        return jax.random.uniform(k, shape, jnp.float32, -0.08, 0.08)

    raw = {'lstm': []}
    for layer in range(num_layers):
        in_dim = encoder_dim if layer == 0 else 2 * units
        dirs = []
        for _direction in range(2):
            key, k1, k2, k3, k4 = jax.random.split(key, 5)
            dirs.append((u(k1, (4 * units, in_dim)),
                         u(k2, (4 * units, units)),
                         u(k3, (4 * units,)),
                         u(k4, (4 * units,))))
        raw['lstm'].append(dirs)
    key, k1, k2 = jax.random.split(key, 3)
    raw['cls_w'] = u(k1, (vocab, 2 * units))
    raw['cls_b'] = u(k2, (vocab,))
    return raw


def _gate_blocks(w):
    """Split the last (4H) axis into PyTorch gate blocks (i, f, g, o)."""
    H = w.shape[-1] // 4
    return w[..., :H], w[..., H:2 * H], w[..., 2 * H:3 * H], w[..., 3 * H:]


def _interleave_gates(wf, wb):
    """Pack fwd/bwd (…, 4H) blocks into (…, 8H) with interleaved columns
    [i_f i_b | f_f f_b | o_f o_b | g_f g_b]."""
    i_f, f_f, g_f, o_f = _gate_blocks(wf)
    i_b, f_b, g_b, o_b = _gate_blocks(wb)
    return jnp.concatenate([i_f, i_b, f_f, f_b, o_f, o_b, g_f, g_b], axis=-1)


def pack_params(raw, *, lane=128):
    """Transpose weights, fold bias_ih+bias_hh, interleave gate columns of both
    directions, build the block-structured (2H, 8H) recurrent weight, and
    lane-pad the classifier to a multiple of 128 output columns."""
    packed = {'layers': []}
    for li, dirs in enumerate(raw['lstm']):
        (wif, whf, bif, bhf), (wib, whb, bib, bhb) = dirs
        H = whf.shape[1]
        wih_cat = _interleave_gates(wif.T, wib.T)                    # (Din, 8H)
        b_cat = _interleave_gates((bif + bhf)[None, :],
                                  (bib + bhb)[None, :])              # (1, 8H)
        zero = jnp.zeros((H, 4 * H), jnp.float32)
        whh_block = jnp.concatenate(
            [_interleave_gates(whf.T, zero),      # rows 0:H  -> h_f contributions
             _interleave_gates(zero, whb.T)],     # rows H:2H -> h_b contributions
            axis=0)                                                  # (2H, 8H)
        if li == 0:
            wih_parts = [wih_cat]
        else:
            # layer input is [out_fwd | out_bwd]: split rows to match the parts
            wih_parts = [wih_cat[:H], wih_cat[H:]]
        packed['layers'].append({
            'wih_parts': wih_parts,
            'b_cat': b_cat,
            'whh_block': whh_block,
        })
    V, two_h = raw['cls_w'].shape
    Vpad = ((V + lane - 1) // lane) * lane
    packed['cls_w_t'] = jnp.zeros((two_h, Vpad), jnp.float32).at[:, :V].set(
        raw['cls_w'].T)                                              # (2H, Vpad)
    packed['cls_b'] = jnp.zeros((1, Vpad), jnp.float32).at[:, :V].set(
        raw['cls_b'])                                                # (1, Vpad)
    packed['vocab'] = V
    return packed


# ---------------------------------------------------------------------------
# Pure-JAX reference (lax.scan, raw PyTorch-layout params) for correctness
# ---------------------------------------------------------------------------
def _ref_direction(x, w_ih, w_hh, b_ih, b_hh, reverse):
    T, B, _ = x.shape
    H = w_hh.shape[1]
    xs = x[::-1] if reverse else x

    def step(carry, xt):
        h, c = carry
        gates = xt @ w_ih.T + h @ w_hh.T + b_ih + b_hh
        i = jax.nn.sigmoid(gates[:, 0 * H:1 * H])
        f = jax.nn.sigmoid(gates[:, 1 * H:2 * H])
        g = jnp.tanh(gates[:, 2 * H:3 * H])
        o = jax.nn.sigmoid(gates[:, 3 * H:4 * H])
        c_new = f * c + i * g
        h_new = o * jnp.tanh(c_new)
        return (h_new, c_new), h_new

    zero = jnp.zeros((B, H), jnp.float32)
    _, ys = lax.scan(step, (zero, zero), xs)
    return ys[::-1] if reverse else ys


def reference_forward(embeddings, raw):
    seq = embeddings
    for layer in raw['lstm']:
        outs = [_ref_direction(seq, *p, reverse=(d == 1))
                for d, p in enumerate(layer)]
        seq = jnp.concatenate(outs, axis=-1)
    flat = seq.reshape(-1, seq.shape[2])
    logits = flat @ raw['cls_w'].T + raw['cls_b']
    return flat, logits.reshape(seq.shape[0], seq.shape[1], -1)


# ---------------------------------------------------------------------------
if __name__ == "__main__":
    SEQ_LEN = 12         # not a multiple of time_block=8 -> exercises padding
    BATCH = 2            # b
    ENCODER_DIM = 32     # args.encoder_dim
    LSTM_UNITS = 32      # args.decoder_lstm_units
    LSTM_LAYERS = 2      # args.decoder_lstm_layers
    VOCAB = 40           # len(alphabet)

    key = jax.random.PRNGKey(0)
    key, pkey, xkey = jax.random.split(key, 3)

    raw_params = init_raw_params(pkey, ENCODER_DIM, LSTM_UNITS, LSTM_LAYERS,
                                 VOCAB)
    packed = pack_params(raw_params)

    embeddings = jax.random.normal(xkey, (SEQ_LEN, BATCH, ENCODER_DIM),
                                   jnp.float32)
    encoder_output = {
        'encoder_out': embeddings,
        'input_shape': (BATCH, 1, 32, 128),         # NCHW of the original image
        'encoder_cnn_shape': (BATCH, ENCODER_DIM, 4, SEQ_LEN),
    }

    out = unalign_ocr_decoder_forward(encoder_output, packed,
                                      time_block=8, unroll=4)
    jax.block_until_ready(out['logits'])
    jax.block_until_ready(out['embeddings'])

    assert out['logits'].shape == (SEQ_LEN, BATCH, VOCAB)
    assert out['embeddings'].shape == (SEQ_LEN * BATCH, 2 * LSTM_UNITS)

    # Cross-check against a pure-JAX lax.scan reference on the raw parameters
    # (validates gate interleave, fused Whh block, direction fusion, time
    # padding/masking and lane-padded classifier end-to-end).
    ref_flat, ref_logits = reference_forward(embeddings, raw_params)
    assert jnp.allclose(out['embeddings'], ref_flat, atol=2e-3, rtol=2e-3), (
        float(jnp.max(jnp.abs(out['embeddings'] - ref_flat))))
    assert jnp.allclose(out['logits'], ref_logits, atol=2e-3, rtol=2e-3), (
        float(jnp.max(jnp.abs(out['logits'] - ref_logits))))

    print("KERNEL_OK")
</pallas_src>

<mosaic_0001>
module attributes {stable_mosaic.version = 11 : i64} {
  func.func @proj_kernel(%arg0: i32, %arg1: memref<32x32xf32, #tpu.memory_space<vmem>>, %arg2: memref<32x256xf32, #tpu.memory_space<vmem>>, %arg3: memref<1x256xf32, #tpu.memory_space<vmem>>, %arg4: memref<32x256xf32, #tpu.memory_space<vmem>>) attributes {dimension_semantics = [#tpu.dimension_semantics<parallel>], iteration_bounds = array<i64: 1>, scalar_prefetch = 0 : i64, scratch_operands = 0 : i64, tpu.core_type = #tpu.core_type<tc>, window_params = [{transform_indices = @transform_0, window_bounds = array<i64: 32, 32>}, {pipeline_mode = #tpu.pipeline_mode<synchronous>, transform_indices = @transform_1, window_bounds = array<i64: 32, 256>}, {pipeline_mode = #tpu.pipeline_mode<synchronous>, transform_indices = @transform_2, window_bounds = array<i64: 1, 256>}, {transform_indices = @transform_3, window_bounds = array<i64: 32, 256>}]} {
    %c0 = arith.constant 0 : index
    %c0_0 = arith.constant 0 : index
    %0 = vector.load %arg1[%c0, %c0_0] : memref<32x32xf32, #tpu.memory_space<vmem>>, vector<32x32xf32>
    %c0_1 = arith.constant 0 : index
    %c0_2 = arith.constant 0 : index
    %1 = vector.load %arg2[%c0_1, %c0_2] : memref<32x256xf32, #tpu.memory_space<vmem>>, vector<32x256xf32>
    %cst = arith.constant dense<0.000000e+00> : vector<32x256xf32>
    %2 = tpu.matmul %0, %1, %cst {dimension_numbers = #tpu.dot_dimension_numbers<[1], [0], [0], [1], [0, 0, 1, 1], [], []>} : vector<32x32xf32>, vector<32x256xf32>, vector<32x256xf32> -> vector<32x256xf32>
    %c0_3 = arith.constant 0 : index
    %c0_4 = arith.constant 0 : index
    %3 = vector.load %arg3[%c0_3, %c0_4] : memref<1x256xf32, #tpu.memory_space<vmem>>, vector<1x256xf32>
    %4 = vector.broadcast %3 : vector<1x256xf32> to vector<32x256xf32>
    %5 = arith.addf %2, %4 : vector<32x256xf32>
    %c0_5 = arith.constant 0 : index
    %c0_6 = arith.constant 0 : index
    %6 = vector.load %arg4[%c0_5, %c0_6] : memref<32x256xf32, #tpu.memory_space<vmem>>, vector<32x256xf32>
    tpu.vector_store %arg4[%c0_5, %c0_6], %5 {strides = array<i32>} : memref<32x256xf32, #tpu.memory_space<vmem>>, vector<32x256xf32>,
    return
  }
  func.func @transform_0(%arg0: i32) -> (i32, i32) {
    %c0_i32 = arith.constant 0 : i32
    %c0_i32_0 = arith.constant 0 : i32
    return %arg0, %c0_i32 : i32, i32
  }
  func.func @transform_1(%arg0: i32) -> (i32, i32) {
    %c0_i32 = arith.constant 0 : i32
    %c0_i32_0 = arith.constant 0 : i32
    %c0_i32_1 = arith.constant 0 : i32
    return %c0_i32, %c0_i32_0 : i32, i32
  }
  func.func @transform_2(%arg0: i32) -> (i32, i32) {
    %c0_i32 = arith.constant 0 : i32
    %c0_i32_0 = arith.constant 0 : i32
    %c0_i32_1 = arith.constant 0 : i32
    return %c0_i32, %c0_i32_0 : i32, i32
  }
  func.func @transform_3(%arg0: i32) -> (i32, i32) {
    %c0_i32 = arith.constant 0 : i32
    %c0_i32_0 = arith.constant 0 : i32
    return %arg0, %c0_i32 : i32, i32
  }
}

</mosaic_0001>

<llo_original>
// kernel: tpu_custom_call.1
$region0: #{tpu_custom_call.1}
  #allocation0 [shape = 'u32[]', space=smem, size = 0x4, offset = 0x4, fixed_abs, tag = 'smem constant byte address 0x4 - core index']
  #allocation1 [shape = 'u32[144,128]{1,0:T(1,128)}', space=vmem, size = 0x12000, scoped, tag = 'internal scratch']
  %s0 = inlined_call_operand.hbm [shape: f32[32,32], index: 0, kind: input, shape index: {}]
  %s1 = inlined_call_operand.hbm [shape: f32[32,256], index: 1, kind: input, shape index: {}]
  %s2 = inlined_call_operand.hbm [shape: f32[1,256], index: 2, kind: input, shape index: {}]
  %s3 = inlined_call_operand.hbm [shape: f32[32,256], index: 3, kind: output, shape index: {}]
  %s4 = sld [smem:[#allocation0]]
  $region34: #{tpu_custom_call.1} parent=0
    _
  %s6 = ssub.s32 1, %s4
  %s7 = scalar_select 0, %s6, %s4
  $region1: #{tpu_custom_call.1} parent=0
    #allocation2 [shape = 'u8[16384]{0}', space=vmem, size = 0x4000, scoped, tag = 'input window, operand 0, single buffered']
    #allocation3 [shape = 's32[1]{0}', space=sflag, size = 0x4, scoped, tag = 'scoped memory for tpu_custom_call.1']
    #allocation4 [shape = 's32[1]{0}', space=sflag, size = 0x4, scoped, tag = 'scoped memory for tpu_custom_call.1']
    #allocation5 [shape = 'u8[32768]{0}', space=vmem, size = 0x8000, scoped, tag = 'input window, operand 1, single buffered']
    #allocation6 [shape = 's32[1]{0}', space=sflag, size = 0x4, scoped, tag = 'scoped memory for tpu_custom_call.1']
    #allocation7 [shape = 'u8[1024]{0}', space=vmem, size = 0x400, scoped, tag = 'input window, operand 2, single buffered']
    #allocation8 [shape = 'u8[32768]{0}', space=vmem, size = 0x8000, scoped, tag = 'output window, operand 0, single buffered']
    %8 = vsyncpa [#allocation3], 0
    %9 = vsyncpa [#allocation6], 0
    %10 = vsyncpa [#allocation4], 0
    // Predicated region
    $region2: #{tpu_custom_call.1} parent=1 // pred_check
      _
    $region3: #{tpu_custom_call.1} parent=1 // pred_check_branch
      %12 = sbr.rel (0) target = $region5
    $region4: #{tpu_custom_call.1} parent=1 // pred_region
      %s14 = ssub.s32 512, 512
      %15 = vsyncadd [#allocation3], %s14
      %s16 = sshll.u32 [#allocation2], 4
      %s17 = int_to_ptr.vmem [resolvable:$true] %s16
      %22 = dma.hbm_to_vmem [thread:$0]  %s0, 512, %s17, [#allocation3], 128, 128, 8
    $region5: #{tpu_custom_call.1} parent=1 // pred_fallthru
      _
    // Predicated region
    $region6: #{tpu_custom_call.1} parent=1 // pred_check
      _
    $region7: #{tpu_custom_call.1} parent=1 // pred_check_branch
      %24 = sbr.rel (0) target = $region9
    $region8: #{tpu_custom_call.1} parent=1 // pred_region
      %s26 = ssub.s32 1024, 1024
      %27 = vsyncadd [#allocation6], %s26
      %s28 = sshll.u32 [#allocation5], 4
      %s29 = int_to_ptr.vmem [resolvable:$true] %s28
      %34 = dma.hbm_to_vmem [thread:$0]  %s1, 1024, %s29, [#allocation6], 256, 256, 16
    $region9: #{tpu_custom_call.1} parent=1 // pred_fallthru
      _
    // Predicated region
    $region10: #{tpu_custom_call.1} parent=1 // pred_check
      _
    $region11: #{tpu_custom_call.1} parent=1 // pred_check_branch
      %36 = sbr.rel (0) target = $region13
    $region12: #{tpu_custom_call.1} parent=1 // pred_region
      %s38 = ssub.s32 32, 32
      %39 = vsyncadd [#allocation6], %s38
      %s41 = sshll.u32 [#allocation7], 4
      %s42 = int_to_ptr.vmem [resolvable:$true] %s41
      %44 = dma.hbm_to_vmem [thread:$0]  %s2, 32, %s42, [#allocation6]
    $region13: #{tpu_custom_call.1} parent=1 // pred_fallthru
      _
    // Predicated region
    $region14: #{tpu_custom_call.1} parent=1 // pred_check
      _
    $region15: #{tpu_custom_call.1} parent=1 // pred_check_branch
      %46 = sbr.rel (0) target = $region17
    $region16: #{tpu_custom_call.1} parent=1 // pred_region
      %47 = dma.done [#allocation3], 512
    $region17: #{tpu_custom_call.1} parent=1 // pred_fallthru
      _
    // Predicated region
    $region18: #{tpu_custom_call.1} parent=1 // pred_check
      _
    $region19: #{tpu_custom_call.1} parent=1 // pred_check_branch
      %49 = sbr.rel (0) target = $region21
    $region20: #{tpu_custom_call.1} parent=1 // pred_region
      %50 = dma.done [#allocation6], 1024
    $region21: #{tpu_custom_call.1} parent=1 // pred_fallthru
      _
    // Predicated region
    $region22: #{tpu_custom_call.1} parent=1 // pred_check
      _
    $region23: #{tpu_custom_call.1} parent=1 // pred_check_branch
      %52 = sbr.rel (0) target = $region25
    $region24: #{tpu_custom_call.1} parent=1 // pred_region
      %53 = dma.done [#allocation6], 32
    $region25: #{tpu_custom_call.1} parent=1 // pred_fallthru
      _
    %v54 = vld [vmem:[#allocation2] sm:$0xff]
    %v55 = vld [vmem:[#allocation2 + $0x8] sm:$0xff]
    %v56 = vld [vmem:[#allocation2 + $0x10] sm:$0xff]
    %v57 = vld [vmem:[#allocation2 + $0x18] sm:$0xff]
    %v58 = vld [vmem:[#allocation5] sm:$0xff]
    %v59 = vld [vmem:[#allocation5 + $0x8] sm:$0xff]
    %v60 = vld [vmem:[#allocation5 + $0x10] sm:$0xff]
    %v61 = vld [vmem:[#allocation5 + $0x18] sm:$0xff]
    %v62 = vld [vmem:[#allocation5 + $0x20] sm:$0xff]
    %v63 = vld [vmem:[#allocation5 + $0x28] sm:$0xff]
    %v64 = vld [vmem:[#allocation5 + $0x30] sm:$0xff]
    %v65 = vld [vmem:[#allocation5 + $0x38] sm:$0xff]
    %v66 = vld [vmem:[#allocation7] sm:$0x3]
    %v68 = vlaneseq
    %v69 = vshrl.u32 %v68, 7
    %v70 = vsub.s32 0, %v69
    %v71 = vrot.slane %v66, %v70
    %v72 = vlaneseq
    %v73 = vshrl.u32 %v72, 7
    %v74 = vsub.s32 1, %v73
    %v75 = vrot.slane %v66, %v74
    %vm78 = vcmask 261120
    %v80 = vsel %vm78, %v54, 0
    %v83 = vsel %vm78, %v55, 0
    %v86 = vsel %vm78, %v56, 0
    %v89 = vsel %vm78, %v57, 0
    %91 = vmatprep.subr.mxu0 %v59
    %92 = vmatpush1.msra.mxu0 %v58
    %93 = vmatprep.subr.mxu0 %v61
    %94 = vmatpush1.msra.mxu0 %v60
    %95 = vmatprep.subr.mxu0 %v63
    %96 = vmatpush1.msra.mxu0 %v62
    %97 = vmatprep.subr.mxu0 %v65
    %98 = vmatpush1.msra.mxu0 %v64
    %99 = vmatprep.subr.mxu0 0.0
    %100 = vmatpush1.msra.mxu0 0.0
    %101 = vmatprep.subr.mxu0 0.0
    %102 = vmatpush1.msra.mxu0 0.0
    %103 = vmatprep.subr.mxu0 0.0
    %104 = vmatpush1.msra.mxu0 0.0
    %105 = vmatprep.subr.mxu0 0.0
    %106 = vmatpush1.msra.mxu0 0.0
    %107 = vmatprep.subr.mxu0 0.0
    %108 = vmatpush1.msra.mxu0 0.0
    %109 = vmatprep.subr.mxu0 0.0
    %110 = vmatpush1.msra.mxu0 0.0
    %111 = vmatprep.subr.mxu0 0.0
    %112 = vmatpush1.msra.mxu0 0.0
    %113 = vmatprep.subr.mxu0 0.0
    %114 = vmatpush1.msra.mxu0 0.0
    %115 = vmatprep.subr.mxu0 0.0
    %116 = vmatpush1.msra.mxu0 0.0
    %117 = vmatprep.subr.mxu0 0.0
    %118 = vmatpush1.msra.mxu0 0.0
    %119 = vmatprep.subr.mxu0 0.0
    %120 = vmatpush1.msra.mxu0 0.0
    %121 = vmatprep.subr.mxu0 0.0
    %122 = vmatpush1.msra.mxu0 0.0
    %123 = vmatprep.subr.mxu0 0.0
    %124 = vmatpush1.msra.mxu0 0.0
    %125 = vmatprep.subr.mxu0 0.0
    %126 = vmatpush1.msra.mxu0 0.0
    %127 = vmatprep.subr.mxu0 0.0
    %128 = vmatpush1.msra.mxu0 0.0
    %129 = vmatprep.subr.mxu0 0.0
    %130 = vmatpush1.msra.mxu0 0.0
    %131 = vmatprep.subr.mxu0 0.0
    %132 = vmatpush1.msra.mxu0 0.0
    %133 = vmatprep.subr.mxu0 0.0
    %134 = vmatpush1.msra.mxu0 0.0
    %135 = vmatprep.subr.mxu0 0.0
    %136 = vmatpush1.msra.mxu0 0.0
    %137 = vmatprep.subr.mxu0 0.0
    %138 = vmatpush1.msra.mxu0 0.0
    %139 = vmatprep.subr.mxu0 0.0
    %140 = vmatpush1.msra.mxu0 0.0
    %141 = vmatprep.subr.mxu0 0.0
    %142 = vmatpush1.msra.mxu0 0.0
    %143 = vmatprep.subr.mxu0 0.0
    %144 = vmatpush1.msra.mxu0 0.0
    %145 = vmatprep.subr.mxu0 0.0
    %146 = vmatpush1.msra.mxu0 0.0
    %147 = vmatprep.subr.mxu0 0.0
    %148 = vmatpush1.msra.mxu0 0.0
    %149 = vmatprep.subr.mxu0 0.0
    %150 = vmatpush1.msra.mxu0 0.0
    %151 = vmatprep.subr.mxu0 0.0
    %152 = vmatpush1.msra.mxu0 0.0
    %153 = vmatprep.subr.mxu0 0.0
    %154 = vmatpush1.msra.mxu0 0.0
    %155 = vmatprep.mubr.f32.mxu0 0.0
    %156 = vmatmul.mubr.f32.gmra.mrb[0].mxu0 %v80
    %v157 = vpop.f32.mrb[0].mxu0
    %v158 = vadd.f32 %v71, %v157
    %v159 = vpop.f32.mrb[0].mxu0
    %v160 = vadd.f32 %v75, %v159
    %161 = vmatprep.mubr.f32.mxu0 0.0
    %162 = vmatmul.mubr.f32.gmra.mrb[0].mxu0 %v83
    %v163 = vpop.f32.mrb[0].mxu0
    %v164 = vadd.f32 %v71, %v163
    %v165 = vpop.f32.mrb[0].mxu0
    %v166 = vadd.f32 %v75, %v165
    %167 = vmatprep.mubr.f32.mxu0 0.0
    %168 = vmatmul.mubr.f32.gmra.mrb[0].mxu0 %v86
    %v169 = vpop.f32.mrb[0].mxu0
    %v170 = vadd.f32 %v71, %v169
    %v171 = vpop.f32.mrb[0].mxu0
    %v172 = vadd.f32 %v75, %v171
    %173 = vmatprep.mubr.f32.mxu0 0.0
    %174 = vmatmul.mubr.f32.gmra.mrb[0].mxu0 %v89
    %v175 = vpop.f32.mrb[0].mxu0
    %v176 = vadd.f32 %v71, %v175
    %v177 = vpop.f32.mrb[0].mxu0
    %v178 = vadd.f32 %v75, %v177
    %179 = vdwg.mxu0
    %180 = vst [vmem:[#allocation8] sm:$0xff] %v158
    %181 = vst [vmem:[#allocation8 + $0x8] sm:$0xff] %v160
    %182 = vst [vmem:[#allocation8 + $0x10] sm:$0xff] %v164
    %183 = vst [vmem:[#allocation8 + $0x18] sm:$0xff] %v166
    %184 = vst [vmem:[#allocation8 + $0x20] sm:$0xff] %v170
    %185 = vst [vmem:[#allocation8 + $0x28] sm:$0xff] %v172
    %186 = vst [vmem:[#allocation8 + $0x30] sm:$0xff] %v176
    %187 = vst [vmem:[#allocation8 + $0x38] sm:$0xff] %v178
    // Predicated region
    $region26: #{tpu_custom_call.1} parent=1 // pred_check
      _
    $region27: #{tpu_custom_call.1} parent=1 // pred_check_branch
      %189 = sbr.rel (0) target = $region29
    $region28: #{tpu_custom_call.1} parent=1 // pred_region
      %s191 = ssub.s32 1024, 1024
      %192 = vsyncadd [#allocation4], %s191
      %s193 = sshll.u32 [#allocation8], 4
      %s194 = int_to_ptr.vmem [resolvable:$true] %s193
      %199 = dma.vmem_to_hbm [thread:$0]  %s194, 1024, %s3, [#allocation4], 256, 256, 16
    $region29: #{tpu_custom_call.1} parent=1 // pred_fallthru
      _
    // Predicated region
    $region30: #{tpu_custom_call.1} parent=1 // pred_check
      _
    $region31: #{tpu_custom_call.1} parent=1 // pred_check_branch
      %201 = sbr.rel (0) target = $region33
    $region32: #{tpu_custom_call.1} parent=1 // pred_region
      %202 = dma.done [#allocation4], 1024
    $region33: #{tpu_custom_call.1} parent=1 // pred_fallthru
      _
    %203 = vsyncpa [#allocation3], 1
    %204 = vsyncpa [#allocation6], 1
    %205 = vsyncpa [#allocation4], 1

</llo_original>
